<compile_context>
chip_gen: v7x
topology: tpu7x:2x2x1
jax: 0.10.0
libtpu: 0.0.40
codegen_flags: <defaults>
</compile_context>

<pallas_src>
import jax
import jax.numpy as jnp
from jax import lax
from jax.experimental import pallas as pl
from jax.experimental.pallas import tpu as pltpu


def _dynconv_kernel(x_ref, a_ref, o_ref):
    # x_ref: (C_blk, V, L)   a_ref: (V, W)   o_ref: (C_blk, W, L)
    x = x_ref[...]
    a_t = a_ref[...].T                                        # (W, V), in-VMEM transpose
    a_b = jnp.broadcast_to(a_t[None, :, :], (x.shape[0],) + a_t.shape)  # (C_blk, W, V)
    acc = lax.dot_general(
        a_b, x,
        dimension_numbers=(((2,), (1,)), ((0,), (0,))),       # batched (W,V)@(V,L)
        preferred_element_type=jnp.float32,
    )                                                         # (C_blk, W, L)
    o_ref[...] = acc.astype(o_ref.dtype)


def _round_up(v, m):
    return (v + m - 1) // m * m


def _pick_c_block(C, V, W, L, itemsize, budget_bytes):
    """Largest divisor of C whose double-buffered, lane-padded VMEM footprint fits."""
    l_pad = _round_up(L, 128)
    a_bytes = 2 * _round_up(V, 8) * _round_up(W, 128) * itemsize

    def step_bytes(cb):
        x_tile = cb * _round_up(V, 8) * l_pad * itemsize
        o_tile = cb * _round_up(W, 8) * l_pad * itemsize
        return 2 * (x_tile + o_tile) + a_bytes

    c_block = 1
    for cb in range(1, C + 1):
        if C % cb == 0 and step_bytes(cb) <= budget_bytes:
            c_block = cb
    return c_block


def dynconv(x, A, *, c_block=None, vmem_budget_bytes=4 * 1024 * 1024):
    """x: (N, C, V, L), A: (N, V, W) -> (N, C, W, L). Same as torch.einsum('ncvl,nvw->ncwl')."""
    N, C, V, L = x.shape
    _, _, W = A.shape
    itemsize = jnp.dtype(x.dtype).itemsize
    if c_block is None:
        c_block = _pick_c_block(C, V, W, L, itemsize, vmem_budget_bytes)

    grid = (N, C // c_block)

    return pl.pallas_call(
        _dynconv_kernel,
        out_shape=jax.ShapeDtypeStruct((N, C, W, L), x.dtype),
        grid_spec=pltpu.PrefetchScalarGridSpec(
            num_scalar_prefetch=0,
            grid=grid,
            in_specs=[
                pl.BlockSpec((None, c_block, V, L), lambda n, c: (n, c, 0, 0)),
                pl.BlockSpec((None, V, W), lambda n, c: (n, 0, 0)),
            ],
            out_specs=pl.BlockSpec((None, c_block, W, L), lambda n, c: (n, c, 0, 0)),
        ),
        compiler_params=pltpu.CompilerParams(
            dimension_semantics=("parallel", "parallel"),
            vmem_limit_bytes=32 * 1024 * 1024,
        ),
    )(x, A)


if __name__ == "__main__":
    # Small shapes consistent with the module's forward:
    #   batch N=2, channels C=4, nodes V=16, target nodes W=16, seq L=8
    N, C, V, W, L = 2, 4, 16, 16, 8

    key = jax.random.PRNGKey(0)
    kx, ka = jax.random.split(key)
    x = jax.random.normal(kx, (N, C, V, L), dtype=jnp.float32)
    A = jax.random.normal(ka, (N, V, W), dtype=jnp.float32)

    out = jax.block_until_ready(dynconv(x, A))

    # Reference check against the einsum semantics (f32 path kept exact).
    ref = jnp.einsum("ncvl,nvw->ncwl", x, A)
    assert out.shape == (N, C, W, L)
    assert jnp.allclose(out, ref, atol=1e-4, rtol=1e-4)

    print("KERNEL_OK")
</pallas_src>

<mosaic_0001>
module attributes {stable_mosaic.version = 11 : i64} {
  func.func @_dynconv_kernel(%arg0: i32, %arg1: i32, %arg2: memref<1x4x16x8xf32, #tpu.memory_space<vmem>>, %arg3: memref<1x16x16xf32, #tpu.memory_space<vmem>>, %arg4: memref<1x4x16x8xf32, #tpu.memory_space<vmem>>) attributes {dimension_semantics = [#tpu.dimension_semantics<parallel>, #tpu.dimension_semantics<parallel>], iteration_bounds = array<i64: 2, 1>, scalar_prefetch = 0 : i64, scratch_operands = 0 : i64, tpu.core_type = #tpu.core_type<tc>, window_params = [{transform_indices = @transform_0, window_bounds = array<i64: 1, 4, 16, 8>}, {transform_indices = @transform_1, window_bounds = array<i64: 1, 16, 16>}, {transform_indices = @transform_2, window_bounds = array<i64: 1, 4, 16, 8>}]} {
    %c0 = arith.constant 0 : index
    %c0_0 = arith.constant 0 : index
    %c0_1 = arith.constant 0 : index
    %c0_2 = arith.constant 0 : index
    %0 = vector.load %arg2[%c0, %c0_0, %c0_1, %c0_2] : memref<1x4x16x8xf32, #tpu.memory_space<vmem>>, vector<1x4x16x8xf32>
    %1 = vector.shape_cast %0 : vector<1x4x16x8xf32> to vector<4x16x8xf32>
    %c0_3 = arith.constant 0 : index
    %c0_4 = arith.constant 0 : index
    %c0_5 = arith.constant 0 : index
    %2 = vector.load %arg3[%c0_3, %c0_4, %c0_5] : memref<1x16x16xf32, #tpu.memory_space<vmem>>, vector<1x16x16xf32>
    %3 = vector.shape_cast %2 : vector<1x16x16xf32> to vector<16x16xf32>
    %4 = tpu.transpose %3, [1, 0] : vector<16x16xf32> -> vector<16x16xf32>
    %5 = vector.shape_cast %4 : vector<16x16xf32> to vector<1x16x16xf32>
    %6 = vector.shape_cast %5 : vector<1x16x16xf32> to vector<1x16x16xf32>
    %7 = vector.broadcast %6 : vector<1x16x16xf32> to vector<4x16x16xf32>
    %cst = arith.constant dense<0.000000e+00> : vector<4x16x8xf32>
    %8 = tpu.matmul %7, %1, %cst {dimension_numbers = #tpu.dot_dimension_numbers<[2], [1], [1], [2], [0, 0, 0, 1, 1, 2], [0], [0]>} : vector<4x16x16xf32>, vector<4x16x8xf32>, vector<4x16x8xf32> -> vector<4x16x8xf32>
    %c0_6 = arith.constant 0 : index
    %c0_7 = arith.constant 0 : index
    %c0_8 = arith.constant 0 : index
    %c0_9 = arith.constant 0 : index
    %9 = vector.load %arg4[%c0_6, %c0_7, %c0_8, %c0_9] : memref<1x4x16x8xf32, #tpu.memory_space<vmem>>, vector<1x4x16x8xf32>
    %10 = vector.shape_cast %9 : vector<1x4x16x8xf32> to vector<4x16x8xf32>
    %11 = vector.shape_cast %8 : vector<4x16x8xf32> to vector<1x4x16x8xf32>
    tpu.vector_store %arg4[%c0_6, %c0_7, %c0_8, %c0_9], %11 {strides = array<i32>} : memref<1x4x16x8xf32, #tpu.memory_space<vmem>>, vector<1x4x16x8xf32>,
    return
  }
  func.func @transform_0(%arg0: i32, %arg1: i32) -> (i32, i32, i32, i32) {
    %c0_i32 = arith.constant 0 : i32
    %c0_i32_0 = arith.constant 0 : i32
    %c0_i32_1 = arith.constant 0 : i32
    return %arg0, %arg1, %c0_i32, %c0_i32_0 : i32, i32, i32, i32
  }
  func.func @transform_1(%arg0: i32, %arg1: i32) -> (i32, i32, i32) {
    %c0_i32 = arith.constant 0 : i32
    %c0_i32_0 = arith.constant 0 : i32
    %c0_i32_1 = arith.constant 0 : i32
    return %arg0, %c0_i32, %c0_i32_0 : i32, i32, i32
  }
  func.func @transform_2(%arg0: i32, %arg1: i32) -> (i32, i32, i32, i32) {
    %c0_i32 = arith.constant 0 : i32
    %c0_i32_0 = arith.constant 0 : i32
    %c0_i32_1 = arith.constant 0 : i32
    return %arg0, %arg1, %c0_i32, %c0_i32_0 : i32, i32, i32, i32
  }
}

</mosaic_0001>

<llo_original>
// kernel: tpu_custom_call.1
$region0: #{tpu_custom_call.1}
  #allocation0 [shape = 'u32[]', space=smem, size = 0x4, offset = 0x4, fixed_abs, tag = 'smem constant byte address 0x4 - core index']
  #allocation1 [shape = 'u32[144,128]{1,0:T(1,128)}', space=vmem, size = 0x12000, scoped, tag = 'internal scratch']
  %s0 = inlined_call_operand.vmem [shape: f32[2,4,16,8], index: 0, kind: input, shape index: {}]
  %s1 = inlined_call_operand.vmem [shape: f32[2,16,16], index: 1, kind: input, shape index: {}]
  %s2 = inlined_call_operand.vmem [shape: f32[2,4,16,8], index: 2, kind: output, shape index: {}]
  %s3 = sld [smem:[#allocation0]]
  $region41: #{tpu_custom_call.1} parent=0
    _
  %s5 = ssub.s32 1, %s3
  %s6 = scalar_select 0, %s5, %s3
  loop: start=0, step=1, limit=4
  $region2: #{tpu_custom_call.1} parent=0 // loop_pre_header
    _
  $region3: #{tpu_custom_call.1} parent=0 // loop_header
    %s8 = sphi 0, %s12
    %p9 = scmp.ge.s32.totalorder %s8, 4
    %s15 = sphi 0, %s27
    %s16 = sphi 0, %s23
    %s17 = sphi 0, %s15
    %s18 = sphi 0, %s16
    %s19 = sphi 0, %s17
    %s20 = sphi 0, %s18
    %s32 = sphi 0, %s34
    %s35 = sphi 0, %s32
    %s36 = sphi 0, %s35
    %s52 = sphi 0, %s36
    %s58 = sphi 0, %s60
    %s61 = sphi 0, %s58
    %s62 = sphi 0, %s61
    %s78 = sphi 0, %s62
    %s86 = sphi 0, %s88
    %s89 = sphi 0, %s86
    %s90 = sphi 0, %s89
    %s106 = sphi 0, %s90
  $region4: #{tpu_custom_call.1} parent=0 // loop_header_branch
    %11 = sbr.rel (%p9) target = $region8
  $region5: #{tpu_custom_call.1} parent=0 // loop_body
    %s13 = ssub.s32 %s8, 1
    %s14 = ssub.s32 %s8, 2
    %s21 = sadd.s32 1, %s16
    %p22 = scmp.ge.s32.totalorder %s21, 1
    %s23 = scalar_select %p22, 0, %s21
    %s24 = sadd.s32 1, %s15
    %s25 = scalar_select %p22, %s24, %s15
    %p26 = scmp.ge.s32.totalorder %s25, 2
    %s27 = scalar_select %p26, 0, %s25
    %s28 = ssub.s32 %s15, %s27
    %s29 = ssub.s32 %s16, %s23
    %s30 = sor.u32 %s28, %s29
    %p31 = scmp.eq.s32.totalorder %s30, 0
    %s33 = sadd.s32 %s32, 1
    %s34 = scalar_select %p31, %s32, %s33
    %p37 = pneg %p31
    %p38 = scmp.eq.s32.totalorder %s8, 1
    %p39 = por %p37, %p38
    %p40 = scmp.ne.s32.totalorder %s32, %s35
    %p41 = scmp.eq.s32.totalorder %s8, 0
    %p42 = por %p40, %p41
    %p43 = scmp.ne.s32.totalorder %s32, %s35
    %p44 = scmp.eq.s32.totalorder %s13, 1
    %p45 = por %p43, %p44
    %p46 = scmp.ne.s32.totalorder %s35, %s36
    %p47 = scmp.eq.s32.totalorder %s13, 0
    %p48 = por %p46, %p47
    %p49 = scmp.ne.s32.totalorder %s35, %s36
    %p50 = scmp.eq.s32.totalorder %s14, 1
    %p51 = por %p49, %p50
    %p53 = scmp.ne.s32.totalorder %s36, %s52
    %p54 = scmp.eq.s32.totalorder %s14, 0
    %p55 = por %p53, %p54
    %s56 = ssub.s32 %s15, %s27
    %p57 = scmp.eq.s32.totalorder %s56, 0
    %s59 = sadd.s32 %s58, 1
    %s60 = scalar_select %p57, %s58, %s59
    %p63 = pneg %p57
    %p64 = scmp.eq.s32.totalorder %s8, 1
    %p65 = por %p63, %p64
    %p66 = scmp.ne.s32.totalorder %s58, %s61
    %p67 = scmp.eq.s32.totalorder %s8, 0
    %p68 = por %p66, %p67
    %p69 = scmp.ne.s32.totalorder %s58, %s61
    %p70 = scmp.eq.s32.totalorder %s13, 1
    %p71 = por %p69, %p70
    %p72 = scmp.ne.s32.totalorder %s61, %s62
    %p73 = scmp.eq.s32.totalorder %s13, 0
    %p74 = por %p72, %p73
    %p75 = scmp.ne.s32.totalorder %s61, %s62
    %p76 = scmp.eq.s32.totalorder %s14, 1
    %p77 = por %p75, %p76
    %p79 = scmp.ne.s32.totalorder %s62, %s78
    %p80 = scmp.eq.s32.totalorder %s14, 0
    %p81 = por %p79, %p80
    %s82 = ssub.s32 %s15, %s27
    %s83 = ssub.s32 %s16, %s23
    %s84 = sor.u32 %s82, %s83
    %p85 = scmp.eq.s32.totalorder %s84, 0
    %s87 = sadd.s32 %s86, 1
    %s88 = scalar_select %p85, %s86, %s87
    %p91 = pneg %p85
    %p92 = scmp.eq.s32.totalorder %s8, 1
    %p93 = por %p91, %p92
    %p94 = scmp.ne.s32.totalorder %s86, %s89
    %p95 = scmp.eq.s32.totalorder %s8, 0
    %p96 = por %p94, %p95
    %p97 = scmp.ne.s32.totalorder %s86, %s89
    %p98 = scmp.eq.s32.totalorder %s13, 1
    %p99 = por %p97, %p98
    %p100 = scmp.ne.s32.totalorder %s89, %s90
    %p101 = scmp.eq.s32.totalorder %s13, 0
    %p102 = por %p100, %p101
    %p103 = scmp.ne.s32.totalorder %s89, %s90
    %p104 = scmp.eq.s32.totalorder %s14, 1
    %p105 = por %p103, %p104
    %p107 = scmp.ne.s32.totalorder %s90, %s106
    %p108 = scmp.eq.s32.totalorder %s14, 0
    %p109 = por %p107, %p108
    %p110 = scmp.le.s32.totalorder 1, %s8
    %p111 = scmp.lt.s32.totalorder %s8, 3
    %p112 = pnand %p110, %p111
    %p113 = pneg %p112
    // Predicated region
    $region9: #{tpu_custom_call.1} parent=5 // pred_check
      _
    $region10: #{tpu_custom_call.1} parent=5 // pred_check_branch
      %115 = sbr.rel (%p112) target = $region12
    $region11: #{tpu_custom_call.1} parent=5 // pred_region
      %s116 = ssub.s32 %s8, 1
    $region12: #{tpu_custom_call.1} parent=5 // pred_fallthru
      _
    %p117 = scmp.lt.s32.totalorder %s8, 2
    // Predicated region
    $region13: #{tpu_custom_call.1} parent=5 // pred_check
      %p118 = pneg %p117
    $region14: #{tpu_custom_call.1} parent=5 // pred_check_branch
      %120 = sbr.rel (%p118) target = $region16
    $region15: #{tpu_custom_call.1} parent=5 // pred_region
      // Predicated region
      $region17: #{tpu_custom_call.1} parent=15 // pred_check
        %p121 = pneg %p42
      $region18: #{tpu_custom_call.1} parent=15 // pred_check_branch
        %123 = sbr.rel (%p121) target = $region20
      $region19: #{tpu_custom_call.1} parent=15 // pred_region
        %s124 = smul.u32 4, %s16
        %p125 = scmp.lt.s32.totalorder %s15, 1
        %s126 = scalar_select %p125, %s15, 1
        %p127 = scmp.lt.s32.totalorder %s124, 3
        %s128 = scalar_select %p127, %s124, 3
        %s129 = smul.addr %s128, 2
        %s130 = smul.addr %s126, 8
        %s131 = sadd.s32 %s129, %s130
        %s132 = smul.addr %s131, 8
        %s133 = scalar_lea.vmem %s0, %s132
        %s134 = smul.u32 4, %s16
      $region20: #{tpu_custom_call.1} parent=15 // pred_fallthru
        _
      // Predicated region
      $region21: #{tpu_custom_call.1} parent=15 // pred_check
        %p135 = pneg %p68
      $region22: #{tpu_custom_call.1} parent=15 // pred_check_branch
        %137 = sbr.rel (%p135) target = $region24
      $region23: #{tpu_custom_call.1} parent=15 // pred_region
        %p138 = scmp.lt.s32.totalorder %s15, 1
        %s139 = scalar_select %p138, %s15, 1
        %s140 = smul.addr %s139, 2
        %s141 = smul.addr %s140, 8
        %s142 = scalar_lea.vmem %s1, %s141
      $region24: #{tpu_custom_call.1} parent=15 // pred_fallthru
        _
    $region16: #{tpu_custom_call.1} parent=5 // pred_fallthru
      _
    %p143 = scmp.le.s32.totalorder 1, %s8
    %p144 = scmp.lt.s32.totalorder %s8, 3
    %p145 = pnand %p143, %p144
    %p146 = pneg %p145
    // Predicated region
    $region25: #{tpu_custom_call.1} parent=5 // pred_check
      _
    $region26: #{tpu_custom_call.1} parent=5 // pred_check_branch
      %148 = sbr.rel (%p145) target = $region28
    $region27: #{tpu_custom_call.1} parent=5 // pred_region
      %s149 = ssub.s32 %s8, 1
      %s150 = smul.u32 4, %s18
      %p151 = scmp.lt.s32.totalorder %s17, 1
      %s152 = scalar_select %p151, %s17, 1
      %p153 = scmp.lt.s32.totalorder %s150, 3
      %s154 = scalar_select %p153, %s150, 3
      %s155 = smul.addr %s154, 2
      %s156 = smul.addr %s152, 8
      %s157 = sadd.s32 %s155, %s156
      %s158 = smul.addr %s157, 8
      %s159 = scalar_lea.vmem %s0, %s158
      %p160 = pneg %p48
      %p161 = pneg %p45
      %p162 = scmp.lt.s32.totalorder %s17, 1
      %s163 = scalar_select %p162, %s17, 1
      %s164 = smul.addr %s163, 2
      %s165 = smul.addr %s164, 8
      %s166 = scalar_lea.vmem %s1, %s165
      %p167 = pneg %p74
      %p168 = pneg %p71
      %p169 = pneg %p102
      %p170 = pneg %p99
      %s171 = smul.u32 4, %s18
      %p172 = scmp.lt.s32.totalorder %s17, 1
      %s173 = scalar_select %p172, %s17, 1
      %p174 = scmp.lt.s32.totalorder %s171, 3
      %s175 = scalar_select %p174, %s171, 3
      %s176 = smul.addr %s175, 2
      %s177 = smul.addr %s173, 8
      %s178 = sadd.s32 %s176, %s177
      %s179 = smul.addr %s178, 8
      %s180 = scalar_lea.vmem %s2, %s179
      %s181 = smul.u32 4, %s18
      %p182 = scmp.lt.s32.totalorder %s17, 1
      %s183 = scalar_select %p182, %s17, 1
      %p184 = scmp.lt.s32.totalorder %s181, 3
      %s185 = scalar_select %p184, %s181, 3
      %s186 = smul.addr %s185, 2
      %s187 = smul.addr %s183, 8
      %s188 = sadd.s32 %s186, %s187
      %s189 = smul.addr %s188, 8
      %s190 = scalar_lea.vmem %s0, %s189
      %s191 = smul.u32 4, %s18
      %p192 = scmp.lt.s32.totalorder %s17, 1
      %s193 = scalar_select %p192, %s17, 1
      %s194 = smul.addr %s193, 2
      %s195 = smul.addr %s194, 8
      %s196 = scalar_lea.vmem %s1, %s195
      %s197 = smul.u32 4, %s18
      %p198 = scmp.lt.s32.totalorder %s17, 1
      %s199 = scalar_select %p198, %s17, 1
      %p200 = scmp.lt.s32.totalorder %s197, 3
      %s201 = scalar_select %p200, %s197, 3
      %s202 = smul.addr %s201, 2
      %s203 = smul.addr %s199, 8
      %s204 = sadd.s32 %s202, %s203
      %s205 = smul.addr %s204, 8
      %s206 = scalar_lea.vmem %s2, %s205
      %s207 = smul.u32 4, %s18
      %v208 = vld [vmem:[%s190] sm:$0xff]
      %v209 = vld [vmem:[%s190 + $0x8] sm:$0xff]
      %v210 = vld [vmem:[%s190 + $0x10] sm:$0xff]
      %v211 = vld [vmem:[%s190 + $0x18] sm:$0xff]
      %v212 = vld [vmem:[%s190 + $0x20] sm:$0xff]
      %v213 = vld [vmem:[%s190 + $0x28] sm:$0xff]
      %v214 = vld [vmem:[%s190 + $0x30] sm:$0xff]
      %v215 = vld [vmem:[%s190 + $0x38] sm:$0xff]
      %v216 = vld [vmem:[%s196] sm:$0xff]
      %v217 = vld [vmem:[%s196 + $0x8] sm:$0xff]
      %218 = vxpose.xlu0.b32.start [1/16] %v216, 128
      %219 = vxpose.xlu0.b32.cont [2/16] %v217, 128
      %220 = vxpose.xlu0.b32.cont [3/16] 0.0, 128
      %221 = vxpose.xlu0.b32.cont [4/16] 0.0, 128
      %222 = vxpose.xlu0.b32.cont [5/16] 0.0, 128
      %223 = vxpose.xlu0.b32.cont [6/16] 0.0, 128
      %224 = vxpose.xlu0.b32.cont [7/16] 0.0, 128
      %225 = vxpose.xlu0.b32.cont [8/16] 0.0, 128
      %226 = vxpose.xlu0.b32.cont [9/16] 0.0, 128
      %227 = vxpose.xlu0.b32.cont [10/16] 0.0, 128
      %228 = vxpose.xlu0.b32.cont [11/16] 0.0, 128
      %229 = vxpose.xlu0.b32.cont [12/16] 0.0, 128
      %230 = vxpose.xlu0.b32.cont [13/16] 0.0, 128
      %231 = vxpose.xlu0.b32.cont [14/16] 0.0, 128
      %232 = vxpose.xlu0.b32.cont [15/16] 0.0, 128
      %233 = vxpose.xlu0.b32.end [16/16] 0.0, 128
      %v234 = vpop.trf.xlu0
      %v235 = vpop.trf.xlu0
      %v236 = vpop.trf.xlu0
      %v237 = vpop.trf.xlu0
      %v238 = vpop.trf.xlu0
      %v239 = vpop.trf.xlu0
      %v240 = vpop.trf.xlu0
      %v241 = vpop.trf.xlu0
      %v242 = vpop.trf.xlu0
      %v243 = vpop.trf.xlu0
      %v244 = vpop.trf.xlu0
      %v245 = vpop.trf.xlu0
      %v246 = vpop.trf.xlu0
      %v247 = vpop.trf.xlu0
      %v248 = vpop.trf.xlu0
      %v249 = vpop.trf.xlu0
      %vm250 = vcmask 130048
      %v252 = vsel %vm250, %v234, 0
      %v255 = vsel %vm250, %v235, 0
      %257 = vmatprep.subr.mxu0 0.0
      %258 = vmatpush1.msra.mxu0 %v208
      %259 = vmatprep.subr.mxu0 0.0
      %260 = vmatpush1.msra.mxu0 %v209
      %261 = vmatprep.subr.mxu0 0.0
      %262 = vmatpush1.msra.mxu0 0.0
      %263 = vmatprep.subr.mxu0 0.0
      %264 = vmatpush1.msra.mxu0 0.0
      %265 = vmatprep.subr.mxu0 0.0
      %266 = vmatpush1.msra.mxu0 0.0
      %267 = vmatprep.subr.mxu0 0.0
      %268 = vmatpush1.msra.mxu0 0.0
      %269 = vmatprep.subr.mxu0 0.0
      %270 = vmatpush1.msra.mxu0 0.0
      %271 = vmatprep.subr.mxu0 0.0
      %272 = vmatpush1.msra.mxu0 0.0
      %273 = vmatprep.subr.mxu0 0.0
      %274 = vmatpush1.msra.mxu0 0.0
      %275 = vmatprep.subr.mxu0 0.0
      %276 = vmatpush1.msra.mxu0 0.0
      %277 = vmatprep.subr.mxu0 0.0
      %278 = vmatpush1.msra.mxu0 0.0
      %279 = vmatprep.subr.mxu0 0.0
      %280 = vmatpush1.msra.mxu0 0.0
      %281 = vmatprep.subr.mxu0 0.0
      %282 = vmatpush1.msra.mxu0 0.0
      %283 = vmatprep.subr.mxu0 0.0
      %284 = vmatpush1.msra.mxu0 0.0
      %285 = vmatprep.subr.mxu0 0.0
      %286 = vmatpush1.msra.mxu0 0.0
      %287 = vmatprep.subr.mxu0 0.0
      %288 = vmatpush1.msra.mxu0 0.0
      %289 = vmatprep.subr.mxu0 0.0
      %290 = vmatpush1.msra.mxu0 0.0
      %291 = vmatprep.subr.mxu0 0.0
      %292 = vmatpush1.msra.mxu0 0.0
      %293 = vmatprep.subr.mxu0 0.0
      %294 = vmatpush1.msra.mxu0 0.0
      %295 = vmatprep.subr.mxu0 0.0
      %296 = vmatpush1.msra.mxu0 0.0
      %297 = vmatprep.subr.mxu0 0.0
      %298 = vmatpush1.msra.mxu0 0.0
      %299 = vmatprep.subr.mxu0 0.0
      %300 = vmatpush1.msra.mxu0 0.0
      %301 = vmatprep.subr.mxu0 0.0
      %302 = vmatpush1.msra.mxu0 0.0
      %303 = vmatprep.subr.mxu0 0.0
      %304 = vmatpush1.msra.mxu0 0.0
      %305 = vmatprep.subr.mxu0 0.0
      %306 = vmatpush1.msra.mxu0 0.0
      %307 = vmatprep.subr.mxu0 0.0
      %308 = vmatpush1.msra.mxu0 0.0
      %309 = vmatprep.subr.mxu0 0.0
      %310 = vmatpush1.msra.mxu0 0.0
      %311 = vmatprep.subr.mxu0 0.0
      %312 = vmatpush1.msra.mxu0 0.0
      %313 = vmatprep.subr.mxu0 0.0
      %314 = vmatpush1.msra.mxu0 0.0
      %315 = vmatprep.subr.mxu0 0.0
      %316 = vmatpush1.msra.mxu0 0.0
      %317 = vmatprep.subr.mxu0 0.0
      %318 = vmatpush1.msra.mxu0 0.0
      %319 = vmatprep.subr.mxu0 0.0
      %320 = vmatpush1.msra.mxu0 0.0
      %321 = vmatprep.mubr.f32.mxu0 0.0
      %322 = vmatmul.mubr.f32.gmra.mrb[0].mxu0 %v252
      %v323 = vpop.f32.mrb[0].mxu0
      %v324 = vadd.f32 0.0, %v323
      %v325 = vpop.f32.mrb[0].mxu0
      %326 = vmatprep.mubr.f32.mxu0 0.0
      %327 = vmatmul.mubr.f32.gmra.mrb[0].mxu0 %v255
      %v328 = vpop.f32.mrb[0].mxu0
      %v329 = vadd.f32 0.0, %v328
      %v330 = vpop.f32.mrb[0].mxu0
      %331 = vdwg.mxu0
      %332 = vmatprep.subr.mxu0 0.0
      %333 = vmatpush1.msra.mxu0 %v210
      %334 = vmatprep.subr.mxu0 0.0
      %335 = vmatpush1.msra.mxu0 %v211
      %336 = vmatprep.subr.mxu0 0.0
      %337 = vmatpush1.msra.mxu0 0.0
      %338 = vmatprep.subr.mxu0 0.0
      %339 = vmatpush1.msra.mxu0 0.0
      %340 = vmatprep.subr.mxu0 0.0
      %341 = vmatpush1.msra.mxu0 0.0
      %342 = vmatprep.subr.mxu0 0.0
      %343 = vmatpush1.msra.mxu0 0.0
      %344 = vmatprep.subr.mxu0 0.0
      %345 = vmatpush1.msra.mxu0 0.0
      %346 = vmatprep.subr.mxu0 0.0
      %347 = vmatpush1.msra.mxu0 0.0
      %348 = vmatprep.subr.mxu0 0.0
      %349 = vmatpush1.msra.mxu0 0.0
      %350 = vmatprep.subr.mxu0 0.0
      %351 = vmatpush1.msra.mxu0 0.0
      %352 = vmatprep.subr.mxu0 0.0
      %353 = vmatpush1.msra.mxu0 0.0
      %354 = vmatprep.subr.mxu0 0.0
      %355 = vmatpush1.msra.mxu0 0.0
      %356 = vmatprep.subr.mxu0 0.0
      %357 = vmatpush1.msra.mxu0 0.0
      %358 = vmatprep.subr.mxu0 0.0
      %359 = vmatpush1.msra.mxu0 0.0
      %360 = vmatprep.subr.mxu0 0.0
      %361 = vmatpush1.msra.mxu0 0.0
      %362 = vmatprep.subr.mxu0 0.0
      %363 = vmatpush1.msra.mxu0 0.0
      %364 = vmatprep.subr.mxu0 0.0
      %365 = vmatpush1.msra.mxu0 0.0
      %366 = vmatprep.subr.mxu0 0.0
      %367 = vmatpush1.msra.mxu0 0.0
      %368 = vmatprep.subr.mxu0 0.0
      %369 = vmatpush1.msra.mxu0 0.0
      %370 = vmatprep.subr.mxu0 0.0
      %371 = vmatpush1.msra.mxu0 0.0
      %372 = vmatprep.subr.mxu0 0.0
      %373 = vmatpush1.msra.mxu0 0.0
      %374 = vmatprep.subr.mxu0 0.0
      %375 = vmatpush1.msra.mxu0 0.0
      %376 = vmatprep.subr.mxu0 0.0
      %377 = vmatpush1.msra.mxu0 0.0
      %378 = vmatprep.subr.mxu0 0.0
      %379 = vmatpush1.msra.mxu0 0.0
      %380 = vmatprep.subr.mxu0 0.0
      %381 = vmatpush1.msra.mxu0 0.0
      %382 = vmatprep.subr.mxu0 0.0
      %383 = vmatpush1.msra.mxu0 0.0
      %384 = vmatprep.subr.mxu0 0.0
      %385 = vmatpush1.msra.mxu0 0.0
      %386 = vmatprep.subr.mxu0 0.0
      %387 = vmatpush1.msra.mxu0 0.0
      %388 = vmatprep.subr.mxu0 0.0
      %389 = vmatpush1.msra.mxu0 0.0
      %390 = vmatprep.subr.mxu0 0.0
      %391 = vmatpush1.msra.mxu0 0.0
      %392 = vmatprep.subr.mxu0 0.0
      %393 = vmatpush1.msra.mxu0 0.0
      %394 = vmatprep.subr.mxu0 0.0
      %395 = vmatpush1.msra.mxu0 0.0
      %396 = vmatprep.mubr.f32.mxu0 0.0
      %397 = vmatmul.mubr.f32.gmra.mrb[0].mxu0 %v252
      %v398 = vpop.f32.mrb[0].mxu0
      %v399 = vadd.f32 0.0, %v398
      %v400 = vpop.f32.mrb[0].mxu0
      %401 = vmatprep.mubr.f32.mxu0 0.0
      %402 = vmatmul.mubr.f32.gmra.mrb[0].mxu0 %v255
      %v403 = vpop.f32.mrb[0].mxu0
      %v404 = vadd.f32 0.0, %v403
      %v405 = vpop.f32.mrb[0].mxu0
      %406 = vdwg.mxu0
      %407 = vmatprep.subr.mxu0 0.0
      %408 = vmatpush1.msra.mxu0 %v212
      %409 = vmatprep.subr.mxu0 0.0
      %410 = vmatpush1.msra.mxu0 %v213
      %411 = vmatprep.subr.mxu0 0.0
      %412 = vmatpush1.msra.mxu0 0.0
      %413 = vmatprep.subr.mxu0 0.0
      %414 = vmatpush1.msra.mxu0 0.0
      %415 = vmatprep.subr.mxu0 0.0
      %416 = vmatpush1.msra.mxu0 0.0
      %417 = vmatprep.subr.mxu0 0.0
      %418 = vmatpush1.msra.mxu0 0.0
      %419 = vmatprep.subr.mxu0 0.0
      %420 = vmatpush1.msra.mxu0 0.0
      %421 = vmatprep.subr.mxu0 0.0
      %422 = vmatpush1.msra.mxu0 0.0
      %423 = vmatprep.subr.mxu0 0.0
      %424 = vmatpush1.msra.mxu0 0.0
      %425 = vmatprep.subr.mxu0 0.0
      %426 = vmatpush1.msra.mxu0 0.0
      %427 = vmatprep.subr.mxu0 0.0
      %428 = vmatpush1.msra.mxu0 0.0
      %429 = vmatprep.subr.mxu0 0.0
      %430 = vmatpush1.msra.mxu0 0.0
      %431 = vmatprep.subr.mxu0 0.0
      %432 = vmatpush1.msra.mxu0 0.0
      %433 = vmatprep.subr.mxu0 0.0
      %434 = vmatpush1.msra.mxu0 0.0
      %435 = vmatprep.subr.mxu0 0.0
      %436 = vmatpush1.msra.mxu0 0.0
      %437 = vmatprep.subr.mxu0 0.0
      %438 = vmatpush1.msra.mxu0 0.0
      %439 = vmatprep.subr.mxu0 0.0
      %440 = vmatpush1.msra.mxu0 0.0
      %441 = vmatprep.subr.mxu0 0.0
      %442 = vmatpush1.msra.mxu0 0.0
      %443 = vmatprep.subr.mxu0 0.0
      %444 = vmatpush1.msra.mxu0 0.0
      %445 = vmatprep.subr.mxu0 0.0
      %446 = vmatpush1.msra.mxu0 0.0
      %447 = vmatprep.subr.mxu0 0.0
      %448 = vmatpush1.msra.mxu0 0.0
      %449 = vmatprep.subr.mxu0 0.0
      %450 = vmatpush1.msra.mxu0 0.0
      %451 = vmatprep.subr.mxu0 0.0
      %452 = vmatpush1.msra.mxu0 0.0
      %453 = vmatprep.subr.mxu0 0.0
      %454 = vmatpush1.msra.mxu0 0.0
      %455 = vmatprep.subr.mxu0 0.0
      %456 = vmatpush1.msra.mxu0 0.0
      %457 = vmatprep.subr.mxu0 0.0
      %458 = vmatpush1.msra.mxu0 0.0
      %459 = vmatprep.subr.mxu0 0.0
      %460 = vmatpush1.msra.mxu0 0.0
      %461 = vmatprep.subr.mxu0 0.0
      %462 = vmatpush1.msra.mxu0 0.0
      %463 = vmatprep.subr.mxu0 0.0
      %464 = vmatpush1.msra.mxu0 0.0
      %465 = vmatprep.subr.mxu0 0.0
      %466 = vmatpush1.msra.mxu0 0.0
      %467 = vmatprep.subr.mxu0 0.0
      %468 = vmatpush1.msra.mxu0 0.0
      %469 = vmatprep.subr.mxu0 0.0
      %470 = vmatpush1.msra.mxu0 0.0
      %471 = vmatprep.mubr.f32.mxu0 0.0
      %472 = vmatmul.mubr.f32.gmra.mrb[0].mxu0 %v252
      %v473 = vpop.f32.mrb[0].mxu0
      %v474 = vadd.f32 0.0, %v473
      %v475 = vpop.f32.mrb[0].mxu0
      %476 = vmatprep.mubr.f32.mxu0 0.0
      %477 = vmatmul.mubr.f32.gmra.mrb[0].mxu0 %v255
      %v478 = vpop.f32.mrb[0].mxu0
      %v479 = vadd.f32 0.0, %v478
      %v480 = vpop.f32.mrb[0].mxu0
      %481 = vdwg.mxu0
      %482 = vmatprep.subr.mxu0 0.0
      %483 = vmatpush1.msra.mxu0 %v214
      %484 = vmatprep.subr.mxu0 0.0
      %485 = vmatpush1.msra.mxu0 %v215
      %486 = vmatprep.subr.mxu0 0.0
      %487 = vmatpush1.msra.mxu0 0.0
      %488 = vmatprep.subr.mxu0 0.0
      %489 = vmatpush1.msra.mxu0 0.0
      %490 = vmatprep.subr.mxu0 0.0
      %491 = vmatpush1.msra.mxu0 0.0
      %492 = vmatprep.subr.mxu0 0.0
      %493 = vmatpush1.msra.mxu0 0.0
      %494 = vmatprep.subr.mxu0 0.0
      %495 = vmatpush1.msra.mxu0 0.0
      %496 = vmatprep.subr.mxu0 0.0
      %497 = vmatpush1.msra.mxu0 0.0
      %498 = vmatprep.subr.mxu0 0.0
      %499 = vmatpush1.msra.mxu0 0.0
      %500 = vmatprep.subr.mxu0 0.0
      %501 = vmatpush1.msra.mxu0 0.0
      %502 = vmatprep.subr.mxu0 0.0
      %503 = vmatpush1.msra.mxu0 0.0
      %504 = vmatprep.subr.mxu0 0.0
      %505 = vmatpush1.msra.mxu0 0.0
      %506 = vmatprep.subr.mxu0 0.0
      %507 = vmatpush1.msra.mxu0 0.0
      %508 = vmatprep.subr.mxu0 0.0
      %509 = vmatpush1.msra.mxu0 0.0
      %510 = vmatprep.subr.mxu0 0.0
      %511 = vmatpush1.msra.mxu0 0.0
      %512 = vmatprep.subr.mxu0 0.0
      %513 = vmatpush1.msra.mxu0 0.0
      %514 = vmatprep.subr.mxu0 0.0
      %515 = vmatpush1.msra.mxu0 0.0
      %516 = vmatprep.subr.mxu0 0.0
      %517 = vmatpush1.msra.mxu0 0.0
      %518 = vmatprep.subr.mxu0 0.0
      %519 = vmatpush1.msra.mxu0 0.0
      %520 = vmatprep.subr.mxu0 0.0
      %521 = vmatpush1.msra.mxu0 0.0
      %522 = vmatprep.subr.mxu0 0.0
      %523 = vmatpush1.msra.mxu0 0.0
      %524 = vmatprep.subr.mxu0 0.0
      %525 = vmatpush1.msra.mxu0 0.0
      %526 = vmatprep.subr.mxu0 0.0
      %527 = vmatpush1.msra.mxu0 0.0
      %528 = vmatprep.subr.mxu0 0.0
      %529 = vmatpush1.msra.mxu0 0.0
      %530 = vmatprep.subr.mxu0 0.0
      %531 = vmatpush1.msra.mxu0 0.0
      %532 = vmatprep.subr.mxu0 0.0
      %533 = vmatpush1.msra.mxu0 0.0
      %534 = vmatprep.subr.mxu0 0.0
      %535 = vmatpush1.msra.mxu0 0.0
      %536 = vmatprep.subr.mxu0 0.0
      %537 = vmatpush1.msra.mxu0 0.0
      %538 = vmatprep.subr.mxu0 0.0
      %539 = vmatpush1.msra.mxu0 0.0
      %540 = vmatprep.subr.mxu0 0.0
      %541 = vmatpush1.msra.mxu0 0.0
      %542 = vmatprep.subr.mxu0 0.0
      %543 = vmatpush1.msra.mxu0 0.0
      %544 = vmatprep.subr.mxu0 0.0
      %545 = vmatpush1.msra.mxu0 0.0
      %546 = vmatprep.mubr.f32.mxu0 0.0
      %547 = vmatmul.mubr.f32.gmra.mrb[0].mxu0 %v252
      %v548 = vpop.f32.mrb[0].mxu0
      %v549 = vadd.f32 0.0, %v548
      %v550 = vpop.f32.mrb[0].mxu0
      %551 = vmatprep.mubr.f32.mxu0 0.0
      %552 = vmatmul.mubr.f32.gmra.mrb[0].mxu0 %v255
      %v553 = vpop.f32.mrb[0].mxu0
      %v554 = vadd.f32 0.0, %v553
      %v555 = vpop.f32.mrb[0].mxu0
      %556 = vdwg.mxu0
      %vm557 = vcmask 64512
      %558 = vst.msk [vmem:[%s206] sm:$0xff] %vm557, %v324
      %559 = vst.msk [vmem:[%s206 + $0x8] sm:$0xff] %vm557, %v329
      %560 = vst.msk [vmem:[%s206 + $0x10] sm:$0xff] %vm557, %v399
      %561 = vst.msk [vmem:[%s206 + $0x18] sm:$0xff] %vm557, %v404
      %562 = vst.msk [vmem:[%s206 + $0x20] sm:$0xff] %vm557, %v474
      %563 = vst.msk [vmem:[%s206 + $0x28] sm:$0xff] %vm557, %v479
      %564 = vst.msk [vmem:[%s206 + $0x30] sm:$0xff] %vm557, %v549
      %565 = vst.msk [vmem:[%s206 + $0x38] sm:$0xff] %vm557, %v554
      %s566 = smul.u32 4, %s18
      %p567 = scmp.lt.s32.totalorder %s17, 1
      %s568 = scalar_select %p567, %s17, 1
      %p569 = scmp.lt.s32.totalorder %s566, 3
      %s570 = scalar_select %p569, %s566, 3
      %s571 = smul.addr %s570, 2
      %s572 = smul.addr %s568, 8
      %s573 = sadd.s32 %s571, %s572
      %s574 = smul.addr %s573, 8
      %s575 = scalar_lea.vmem %s2, %s574
      // Predicated region
      $region29: #{tpu_custom_call.1} parent=27 // pred_check
        %p576 = pneg %p99
      $region30: #{tpu_custom_call.1} parent=27 // pred_check_branch
        %578 = sbr.rel (%p576) target = $region32
      $region31: #{tpu_custom_call.1} parent=27 // pred_region
        %s579 = smul.u32 4, %s18
      $region32: #{tpu_custom_call.1} parent=27 // pred_fallthru
        _
    $region28: #{tpu_custom_call.1} parent=5 // pred_fallthru
      _
    %p580 = scmp.le.s32.totalorder 2, %s8
    // Predicated region
    $region33: #{tpu_custom_call.1} parent=5 // pred_check
      %p581 = pneg %p580
    $region34: #{tpu_custom_call.1} parent=5 // pred_check_branch
      %583 = sbr.rel (%p581) target = $region36
    $region35: #{tpu_custom_call.1} parent=5 // pred_region
      %s584 = ssub.s32 %s8, 2
      // Predicated region
      $region37: #{tpu_custom_call.1} parent=35 // pred_check
        %p585 = pneg %p105
      $region38: #{tpu_custom_call.1} parent=35 // pred_check_branch
        %587 = sbr.rel (%p585) target = $region40
      $region39: #{tpu_custom_call.1} parent=35 // pred_region
        %s588 = smul.u32 4, %s20
        %p589 = scmp.lt.s32.totalorder %s19, 1
        %s590 = scalar_select %p589, %s19, 1
        %p591 = scmp.lt.s32.totalorder %s588, 3
        %s592 = scalar_select %p591, %s588, 3
        %s593 = smul.addr %s592, 2
        %s594 = smul.addr %s590, 8
        %s595 = sadd.s32 %s593, %s594
        %s596 = smul.addr %s595, 8
        %s597 = scalar_lea.vmem %s2, %s596
      $region40: #{tpu_custom_call.1} parent=35 // pred_fallthru
        _
    $region36: #{tpu_custom_call.1} parent=5 // pred_fallthru
      _
  $region6: #{tpu_custom_call.1} parent=0 // loop_footer
    %s12 = sadd.s32 1, %s8
  $region7: #{tpu_custom_call.1} parent=0 // loop_footer_branch
    %7 = sbr.rel target = $region3
  $region8: #{tpu_custom_call.1} parent=0 // loop_exit
    _

</llo_original>
